<compile_context>
chip_gen: v5e
topology: v5e:2x2
jax: 0.10.0
libtpu: 0.0.40
codegen_flags: <defaults>
</compile_context>

<pallas_src>
import jax
import jax.numpy as jnp
from jax.experimental import pallas as pl
from jax.experimental.pallas import tpu as pltpu

EPS = 1e-5


def ca_market_kernel(x_ref, w1_ref, w2_ref, b2_ref, out_ref):
    # x_ref : (TB, C, HW) f32   raw pixels for TB batch rows
    # w1_ref: (C,  F)     f32   backbone linear weight with eval-BN scale folded in
    # w2_ref: (F,  Np)    bf16  [attr_lin | id_lin] fused, zero-padded to Np % 128 == 0
    # b2_ref: (1,  Np)    f32   fused head bias with (backbone bias + BN shift) @ w2 folded in
    # out_ref:(TB, Np)    f32   lane-dense fused head output
    pooled = jnp.mean(x_ref[...], axis=-1)                       # GAP, f32 XLU reduce
    feats = jnp.dot(pooled, w1_ref[...],
                    preferred_element_type=jnp.float32)          # backbone + BN (f32)
    # Dropout(p=0.5) in eval mode is identity.
    # TODO(synk): train-mode dropout (pltpu.prng_random_bits mask) not implemented.
    out = jnp.dot(feats.astype(jnp.bfloat16), w2_ref[...],
                  preferred_element_type=jnp.float32) + b2_ref[...]
    out_ref[...] = out
    # (Output kept f32; cast to bf16 here if downstream tolerates halved precision.)


def _round_up(n, m):
    return ((n + m - 1) // m) * m


def _pad_to(a, axis, mult):
    pad = (-a.shape[axis]) % mult
    if pad == 0:
        return a
    widths = [(0, 0)] * a.ndim
    widths[axis] = (0, pad)
    return jnp.pad(a, widths)


def prepare_params(params, *, head_pad=128):
    """One-time host-side constant folding (run once, outside the hot path).

    For very large num_id on v6e/v7x, use head_pad=256 to match the 256-wide MXU.
    """
    inv_std = jax.lax.rsqrt(params["var"] + EPS)                    # (1, F)
    bn_scale = params["gamma"] * inv_std                            # (1, F)
    # BN scale folded (exactly, in f32) into the backbone linear weight.
    w1 = params["wb"] * bn_scale                                    # (C, F) f32
    # Backbone bias + BN shift, pushed through the heads below.
    b1 = (params["bb"] - params["mean"]) * bn_scale + params["beta"]  # (1, F)
    # Fuse the two heads into one lane-dense matmul.
    w2 = jnp.concatenate([params["wa"], params["wid"]], axis=1)     # (F, A+N) f32
    b2 = jnp.concatenate([params["ba"], params["bid"]], axis=1)     # (1, A+N)
    b2 = b2 + b1 @ w2                                               # bias folded through head (f32)
    w2 = _pad_to(w2, 1, head_pad).astype(jnp.bfloat16)              # bf16 MXU operand
    b2 = _pad_to(b2, 1, head_pad)
    return {
        "w1": w1, "w2": w2, "b2": b2,
        "attr_dim": int(params["wa"].shape[1]),
        "num_id": int(params["wid"].shape[1]),
    }


def ca_market_forward(x, prepped):
    B, C, H, W = x.shape
    HW = H * W
    w1, w2, b2 = prepped["w1"], prepped["w2"], prepped["b2"]
    F = w1.shape[1]
    Np = w2.shape[1]
    attr_dim = prepped["attr_dim"]
    num_id = prepped["num_id"]

    # ---- batch tiling: as large as possible, but keep >= 2 grid steps when
    # ---- B >= 16 so both v7x TensorCores get work.
    Bp = _round_up(B, 8)
    tb = min(128, Bp)
    if Bp >= 16 and Bp // tb < 2:
        tb = _round_up(pl.cdiv(Bp, 2), 8)
    Bp = _round_up(Bp, tb)

    x3 = x.reshape(B, C, HW)
    if Bp != B:
        x3 = jnp.pad(x3, ((0, Bp - B), (0, 0), (0, 0)))
    # NOTE: x stays f32; the kernel casts per-tile (no extra wrapper pass over x).

    out = pl.pallas_call(
        ca_market_kernel,
        out_shape=jax.ShapeDtypeStruct((Bp, Np), jnp.float32),
        grid_spec=pltpu.PrefetchScalarGridSpec(
            num_scalar_prefetch=0,
            grid=(Bp // tb,),
            in_specs=[
                pl.BlockSpec((tb, C, HW), lambda i: (i, 0, 0)),  # x tile (pipelined over B)
                pl.BlockSpec((C, F), lambda i: (0, 0)),          # folded backbone+BN weight (f32)
                pl.BlockSpec((F, Np), lambda i: (0, 0)),         # fused head weight (bf16)
                pl.BlockSpec((1, Np), lambda i: (0, 0)),         # fused head bias (f32)
            ],
            out_specs=pl.BlockSpec((tb, Np), lambda i: (i, 0)),
        ),
        compiler_params=pltpu.CompilerParams(
            dimension_semantics=("parallel",)),
    )(x3, w1, w2, b2)

    attr = out[:B, :attr_dim]
    out_id = out[:B, attr_dim:attr_dim + num_id]
    return {"id": out_id, "attr": attr}


def reference_forward(x, params):
    """Pure-JAX f32 reference mirroring the PyTorch eval-mode forward."""
    B, C, H, W = x.shape
    pooled = jnp.mean(x.reshape(B, C, H * W), axis=-1)
    feats = pooled @ params["wb"] + params["bb"]
    feats = (feats - params["mean"]) * jax.lax.rsqrt(params["var"] + EPS) \
        * params["gamma"] + params["beta"]
    attr = feats @ params["wa"] + params["ba"]
    out_id = feats @ params["wid"] + params["bid"]
    return {"id": out_id, "attr": attr}


def make_params(key, C, feature_dim, attr_dim, num_id):
    ks = jax.random.split(key, 8)
    scale = 0.05
    return {
        # synthetic backbone linear (C -> feature_dim); stored as (in, out) == W^T
        "wb": scale * jax.random.normal(ks[0], (C, feature_dim), jnp.float32),
        "bb": scale * jax.random.normal(ks[1], (1, feature_dim), jnp.float32),
        # BatchNorm1d(feature_dim) params + running stats (eval mode)
        "gamma": 1.0 + 0.1 * jax.random.normal(ks[2], (1, feature_dim), jnp.float32),
        "beta": 0.1 * jax.random.normal(ks[3], (1, feature_dim), jnp.float32),
        "mean": 0.1 * jax.random.normal(ks[4], (1, feature_dim), jnp.float32),
        "var": jnp.abs(1.0 + 0.1 * jax.random.normal(ks[5], (1, feature_dim), jnp.float32)),
        # attr_lin: Linear(feature_dim, 46); stored as W^T (in, out)
        "wa": scale * jax.random.normal(ks[6], (feature_dim, attr_dim), jnp.float32),
        "ba": jnp.zeros((1, attr_dim), jnp.float32),
        # id_lin: Linear(feature_dim, num_id); stored as W^T (in, out)
        "wid": scale * jax.random.normal(ks[7], (feature_dim, num_id), jnp.float32),
        "bid": jnp.zeros((1, num_id), jnp.float32),
    }


if __name__ == "__main__":
    B, C, H, W = 16, 4, 16, 16
    feature_dim, attr_dim, num_id = 128, 46, 64

    key = jax.random.PRNGKey(0)
    kx, kp = jax.random.split(key)
    x = jax.random.normal(kx, (B, C, H, W), jnp.float32)
    params = make_params(kp, C, feature_dim, attr_dim, num_id)

    prepped = prepare_params(params)          # one-time weight folding / padding
    out = ca_market_forward(x, prepped)
    jax.block_until_ready(out)

    ref = reference_forward(x, params)
    assert out["attr"].shape == (B, attr_dim)
    assert out["id"].shape == (B, num_id)
    # Only the head matmul uses bf16 operands (f32 accumulation) -> ~1e-3 error
    assert jnp.allclose(out["attr"], ref["attr"], atol=2e-2, rtol=2e-2)
    assert jnp.allclose(out["id"], ref["id"], atol=2e-2, rtol=2e-2)

    print("KERNEL_OK")
</pallas_src>

<mosaic_0001>
module attributes {stable_mosaic.version = 11 : i64} {
  func.func @ca_market_kernel(%arg0: i32, %arg1: memref<8x4x256xf32, #tpu.memory_space<vmem>>, %arg2: memref<4x128xf32, #tpu.memory_space<vmem>>, %arg3: memref<128x128xbf16, #tpu.memory_space<vmem>>, %arg4: memref<1x128xf32, #tpu.memory_space<vmem>>, %arg5: memref<8x128xf32, #tpu.memory_space<vmem>>) attributes {dimension_semantics = [#tpu.dimension_semantics<parallel>], iteration_bounds = array<i64: 2>, scalar_prefetch = 0 : i64, scratch_operands = 0 : i64, tpu.core_type = #tpu.core_type<tc>, window_params = [{transform_indices = @transform_0, window_bounds = array<i64: 8, 4, 256>}, {pipeline_mode = #tpu.pipeline_mode<synchronous>, transform_indices = @transform_1, window_bounds = array<i64: 4, 128>}, {pipeline_mode = #tpu.pipeline_mode<synchronous>, transform_indices = @transform_2, window_bounds = array<i64: 128, 128>}, {pipeline_mode = #tpu.pipeline_mode<synchronous>, transform_indices = @transform_3, window_bounds = array<i64: 1, 128>}, {transform_indices = @transform_4, window_bounds = array<i64: 8, 128>}]} {
    %c0 = arith.constant 0 : index
    %c0_0 = arith.constant 0 : index
    %c0_1 = arith.constant 0 : index
    %0 = vector.load %arg1[%c0, %c0_0, %c0_1] : memref<8x4x256xf32, #tpu.memory_space<vmem>>, vector<8x4x256xf32>
    %cst = arith.constant dense<0.000000e+00> : vector<8x4xf32>
    %1 = vector.multi_reduction <add>, %0, %cst [2] : vector<8x4x256xf32> to vector<8x4xf32>
    %cst_2 = arith.constant 2.560000e+02 : f32
    %2 = vector.broadcast %cst_2 : f32 to vector<8x4xf32>
    %3 = arith.divf %1, %2 : vector<8x4xf32>
    %c0_3 = arith.constant 0 : index
    %c0_4 = arith.constant 0 : index
    %4 = vector.load %arg2[%c0_3, %c0_4] : memref<4x128xf32, #tpu.memory_space<vmem>>, vector<4x128xf32>
    %cst_5 = arith.constant dense<0.000000e+00> : vector<8x128xf32>
    %5 = tpu.matmul %3, %4, %cst_5 {dimension_numbers = #tpu.dot_dimension_numbers<[1], [0], [0], [1], [0, 0, 1, 1], [], []>} : vector<8x4xf32>, vector<4x128xf32>, vector<8x128xf32> -> vector<8x128xf32>
    %6 = arith.truncf %5 : vector<8x128xf32> to vector<8x128xbf16>
    %c0_6 = arith.constant 0 : index
    %c0_7 = arith.constant 0 : index
    %7 = vector.load %arg3[%c0_6, %c0_7] : memref<128x128xbf16, #tpu.memory_space<vmem>>, vector<128x128xbf16>
    %cst_8 = arith.constant dense<0.000000e+00> : vector<8x128xf32>
    %8 = tpu.matmul %6, %7, %cst_8 {dimension_numbers = #tpu.dot_dimension_numbers<[1], [0], [0], [1], [0, 0, 1, 1], [], []>} : vector<8x128xbf16>, vector<128x128xbf16>, vector<8x128xf32> -> vector<8x128xf32>
    %c0_9 = arith.constant 0 : index
    %c0_10 = arith.constant 0 : index
    %9 = vector.load %arg4[%c0_9, %c0_10] : memref<1x128xf32, #tpu.memory_space<vmem>>, vector<1x128xf32>
    %10 = vector.broadcast %9 : vector<1x128xf32> to vector<8x128xf32>
    %11 = arith.addf %8, %10 : vector<8x128xf32>
    %c0_11 = arith.constant 0 : index
    %c0_12 = arith.constant 0 : index
    %12 = vector.load %arg5[%c0_11, %c0_12] : memref<8x128xf32, #tpu.memory_space<vmem>>, vector<8x128xf32>
    tpu.vector_store %arg5[%c0_11, %c0_12], %11 {strides = array<i32>} : memref<8x128xf32, #tpu.memory_space<vmem>>, vector<8x128xf32>,
    return
  }
  func.func @transform_0(%arg0: i32) -> (i32, i32, i32) {
    %c0_i32 = arith.constant 0 : i32
    %c0_i32_0 = arith.constant 0 : i32
    %c0_i32_1 = arith.constant 0 : i32
    return %arg0, %c0_i32, %c0_i32_0 : i32, i32, i32
  }
  func.func @transform_1(%arg0: i32) -> (i32, i32) {
    %c0_i32 = arith.constant 0 : i32
    %c0_i32_0 = arith.constant 0 : i32
    %c0_i32_1 = arith.constant 0 : i32
    return %c0_i32, %c0_i32_0 : i32, i32
  }
  func.func @transform_2(%arg0: i32) -> (i32, i32) {
    %c0_i32 = arith.constant 0 : i32
    %c0_i32_0 = arith.constant 0 : i32
    %c0_i32_1 = arith.constant 0 : i32
    return %c0_i32, %c0_i32_0 : i32, i32
  }
  func.func @transform_3(%arg0: i32) -> (i32, i32) {
    %c0_i32 = arith.constant 0 : i32
    %c0_i32_0 = arith.constant 0 : i32
    %c0_i32_1 = arith.constant 0 : i32
    return %c0_i32, %c0_i32_0 : i32, i32
  }
  func.func @transform_4(%arg0: i32) -> (i32, i32) {
    %c0_i32 = arith.constant 0 : i32
    %c0_i32_0 = arith.constant 0 : i32
    return %arg0, %c0_i32 : i32, i32
  }
}

</mosaic_0001>

<llo_original>
// kernel: tpu_custom_call.1
$region0: #{tpu_custom_call.1}
  #allocation0 [shape = 'u32[]', space=smem, size = 0x4, offset = 0x4, fixed_abs, tag = 'smem constant byte address 0x4 - core index']
  #allocation1 [shape = 'u32[72,128]{1,0:T(1,128)}', space=vmem, size = 0x9000, scoped, tag = 'internal scratch']
  %s0 = inlined_call_operand.hbm [shape: f32[16,4,256], index: 0, kind: input, shape index: {}]
  %s1 = inlined_call_operand.hbm [shape: f32[4,128], index: 1, kind: input, shape index: {}]
  %s2 = inlined_call_operand.hbm [shape: bf16[128,128], index: 2, kind: input, shape index: {}]
  %s3 = inlined_call_operand.vmem [shape: f32[1,128], index: 3, kind: input, shape index: {}]
  %s4 = inlined_call_operand.hbm [shape: f32[16,128], index: 4, kind: output, shape index: {}]
  %s5 = sld [smem:[#allocation0]]
  $region61: #{tpu_custom_call.1} parent=0
    _
  %s7 = ssub.s32 1, %s5
  %s8 = scalar_select 0, %s7, %s5
  $region1: #{tpu_custom_call.1} parent=0
    #allocation2 [shape = 'u8[65536]{0}', space=vmem, size = 0x10000, scoped, tag = 'input window, operand 0']
    #allocation3 [shape = 's32[2]{0}', space=sflag, size = 0x8, scoped, tag = 'scoped memory for tpu_custom_call.1']
    #allocation4 [shape = 's32[2]{0}', space=sflag, size = 0x8, scoped, tag = 'scoped memory for tpu_custom_call.1']
    #allocation5 [shape = 'u8[2048]{0}', space=vmem, size = 0x800, scoped, tag = 'input window, operand 1, single buffered']
    #allocation6 [shape = 's32[1]{0}', space=sflag, size = 0x4, scoped, tag = 'scoped memory for tpu_custom_call.1']
    #allocation7 [shape = 'u8[32768]{0}', space=vmem, size = 0x8000, scoped, tag = 'input window, operand 2, single buffered']
    #allocation8 [shape = 'u8[8192]{0}', space=vmem, size = 0x2000, scoped, tag = 'output window, operand 0']
    %9 = vsyncpa [#allocation3], 0
    %s10 = scalar_lea.sflag [#allocation3], 1
    %11 = vsyncpa %s10, 0
    %12 = vsyncpa [#allocation6], 0
    %13 = vsyncpa [#allocation4], 0
    %s14 = scalar_lea.sflag [#allocation4], 1
    %15 = vsyncpa %s14, 0
    loop: start=0, step=1, limit=4
    $region2: #{tpu_custom_call.1} parent=1 // loop_pre_header
      _
    $region3: #{tpu_custom_call.1} parent=1 // loop_header
      %s17 = sphi 0, %s21
      %p18 = scmp.ge.s32.totalorder %s17, 4
      %s27 = sphi 0, %s29
      %s30 = sphi 0, %s27
      %s31 = sphi 0, %s30
      %s47 = sphi 0, %s31
      %s51 = sphi 0, %s51
      %s53 = sphi 0, %s51
      %s54 = sphi 0, %s53
      %s68 = sphi 0, %s54
      %s72 = sphi 0, %s72
      %s74 = sphi 0, %s72
      %s75 = sphi 0, %s74
      %s89 = sphi 0, %s75
      %s93 = sphi 0, %s93
      %s95 = sphi 0, %s93
      %s96 = sphi 0, %s95
      %s110 = sphi 0, %s96
      %s116 = sphi 0, %s118
      %s119 = sphi 0, %s116
      %s120 = sphi 0, %s119
      %s136 = sphi 0, %s120
    $region4: #{tpu_custom_call.1} parent=1 // loop_header_branch
      %20 = sbr.rel (%p18) target = $region8
    $region5: #{tpu_custom_call.1} parent=1 // loop_body
      %s22 = ssub.s32 %s17, 1
      %s23 = ssub.s32 %s17, 2
      %s24 = sadd.s32 %s17, 1
      %s25 = ssub.s32 %s17, %s24
      %p26 = scmp.eq.s32.totalorder %s25, 0
      %s28 = sadd.s32 %s27, 1
      %s29 = scalar_select %p26, %s27, %s28
      %p32 = pneg %p26
      %p33 = scmp.eq.s32.totalorder %s17, 1
      %p34 = por %p32, %p33
      %p35 = scmp.ne.s32.totalorder %s27, %s30
      %p36 = scmp.eq.s32.totalorder %s17, 0
      %p37 = por %p35, %p36
      %p38 = scmp.ne.s32.totalorder %s27, %s30
      %p39 = scmp.eq.s32.totalorder %s22, 1
      %p40 = por %p38, %p39
      %p41 = scmp.ne.s32.totalorder %s30, %s31
      %p42 = scmp.eq.s32.totalorder %s22, 0
      %p43 = por %p41, %p42
      %p44 = scmp.ne.s32.totalorder %s30, %s31
      %p45 = scmp.eq.s32.totalorder %s23, 1
      %p46 = por %p44, %p45
      %p48 = scmp.ne.s32.totalorder %s31, %s47
      %p49 = scmp.eq.s32.totalorder %s23, 0
      %p50 = por %p48, %p49
      %s52 = sadd.s32 %s51, 1
      %p55 = scmp.eq.s32.totalorder %s17, 1
      %p56 = scmp.ne.s32.totalorder %s51, %s53
      %p57 = scmp.eq.s32.totalorder %s17, 0
      %p58 = por %p56, %p57
      %p59 = scmp.ne.s32.totalorder %s51, %s53
      %p60 = scmp.eq.s32.totalorder %s22, 1
      %p61 = por %p59, %p60
      %p62 = scmp.ne.s32.totalorder %s53, %s54
      %p63 = scmp.eq.s32.totalorder %s22, 0
      %p64 = por %p62, %p63
      %p65 = scmp.ne.s32.totalorder %s53, %s54
      %p66 = scmp.eq.s32.totalorder %s23, 1
      %p67 = por %p65, %p66
      %p69 = scmp.ne.s32.totalorder %s54, %s68
      %p70 = scmp.eq.s32.totalorder %s23, 0
      %p71 = por %p69, %p70
      %s73 = sadd.s32 %s72, 1
      %p76 = scmp.eq.s32.totalorder %s17, 1
      %p77 = scmp.ne.s32.totalorder %s72, %s74
      %p78 = scmp.eq.s32.totalorder %s17, 0
      %p79 = por %p77, %p78
      %p80 = scmp.ne.s32.totalorder %s72, %s74
      %p81 = scmp.eq.s32.totalorder %s22, 1
      %p82 = por %p80, %p81
      %p83 = scmp.ne.s32.totalorder %s74, %s75
      %p84 = scmp.eq.s32.totalorder %s22, 0
      %p85 = por %p83, %p84
      %p86 = scmp.ne.s32.totalorder %s74, %s75
      %p87 = scmp.eq.s32.totalorder %s23, 1
      %p88 = por %p86, %p87
      %p90 = scmp.ne.s32.totalorder %s75, %s89
      %p91 = scmp.eq.s32.totalorder %s23, 0
      %p92 = por %p90, %p91
      %s94 = sadd.s32 %s93, 1
      %p97 = scmp.eq.s32.totalorder %s17, 1
      %p98 = scmp.ne.s32.totalorder %s93, %s95
      %p99 = scmp.eq.s32.totalorder %s17, 0
      %p100 = por %p98, %p99
      %p101 = scmp.ne.s32.totalorder %s93, %s95
      %p102 = scmp.eq.s32.totalorder %s22, 1
      %p103 = por %p101, %p102
      %p104 = scmp.ne.s32.totalorder %s95, %s96
      %p105 = scmp.eq.s32.totalorder %s22, 0
      %p106 = por %p104, %p105
      %p107 = scmp.ne.s32.totalorder %s95, %s96
      %p108 = scmp.eq.s32.totalorder %s23, 1
      %p109 = por %p107, %p108
      %p111 = scmp.ne.s32.totalorder %s96, %s110
      %p112 = scmp.eq.s32.totalorder %s23, 0
      %p113 = por %p111, %p112
      %s114 = ssub.s32 %s17, %s24
      %p115 = scmp.eq.s32.totalorder %s114, 0
      %s117 = sadd.s32 %s116, 1
      %s118 = scalar_select %p115, %s116, %s117
      %p121 = pneg %p115
      %p122 = scmp.eq.s32.totalorder %s17, 1
      %p123 = por %p121, %p122
      %p124 = scmp.ne.s32.totalorder %s116, %s119
      %p125 = scmp.eq.s32.totalorder %s17, 0
      %p126 = por %p124, %p125
      %p127 = scmp.ne.s32.totalorder %s116, %s119
      %p128 = scmp.eq.s32.totalorder %s22, 1
      %p129 = por %p127, %p128
      %p130 = scmp.ne.s32.totalorder %s119, %s120
      %p131 = scmp.eq.s32.totalorder %s22, 0
      %p132 = por %p130, %p131
      %p133 = scmp.ne.s32.totalorder %s119, %s120
      %p134 = scmp.eq.s32.totalorder %s23, 1
      %p135 = por %p133, %p134
      %p137 = scmp.ne.s32.totalorder %s120, %s136
      %p138 = scmp.eq.s32.totalorder %s23, 0
      %p139 = por %p137, %p138
      %p140 = scmp.le.s32.totalorder 1, %s17
      %p141 = scmp.lt.s32.totalorder %s17, 3
      %p142 = pnand %p140, %p141
      %p143 = pneg %p142
      // Predicated region
      $region9: #{tpu_custom_call.1} parent=5 // pred_check
        _
      $region10: #{tpu_custom_call.1} parent=5 // pred_check_branch
        %145 = sbr.rel (%p142) target = $region12
      $region11: #{tpu_custom_call.1} parent=5 // pred_region
        %s146 = ssub.s32 %s17, 1
        // Predicated region
        $region13: #{tpu_custom_call.1} parent=11 // pred_check
          %p147 = pneg %p64
        $region14: #{tpu_custom_call.1} parent=11 // pred_check_branch
          %149 = sbr.rel (%p147) target = $region16
        $region15: #{tpu_custom_call.1} parent=11 // pred_region
          %151 = vsyncadd [#allocation6], 0
          %s153 = sshll.u32 %s1, 4
          %s154 = int_to_ptr.hbm [resolvable:$true] %s153
          %s155 = sshll.u32 [#allocation5], 4
          %s156 = int_to_ptr.vmem [resolvable:$true] %s155
          %158 = dma.hbm_to_vmem [thread:$0]  %s154, 64, %s156, [#allocation6]
        $region16: #{tpu_custom_call.1} parent=11 // pred_fallthru
          _
        // Predicated region
        $region17: #{tpu_custom_call.1} parent=11 // pred_check
          %p159 = pneg %p85
        $region18: #{tpu_custom_call.1} parent=11 // pred_check_branch
          %161 = sbr.rel (%p159) target = $region20
        $region19: #{tpu_custom_call.1} parent=11 // pred_region
          %163 = vsyncadd [#allocation6], 0
          %s164 = sshll.u32 %s2, 4
          %s165 = int_to_ptr.hbm [resolvable:$true] %s164
          %s166 = sshll.u32 [#allocation7], 4
          %s167 = int_to_ptr.vmem [resolvable:$true] %s166
          %172 = dma.hbm_to_vmem [thread:$0]  %s165, 1024, %s167, [#allocation6], 64, 64, 4
        $region20: #{tpu_custom_call.1} parent=11 // pred_fallthru
          _
        // Predicated region
        $region21: #{tpu_custom_call.1} parent=11 // pred_check
          %p173 = pneg %p106
        $region22: #{tpu_custom_call.1} parent=11 // pred_check_branch
          %175 = sbr.rel (%p173) target = $region24
        $region23: #{tpu_custom_call.1} parent=11 // pred_region
          _
        $region24: #{tpu_custom_call.1} parent=11 // pred_fallthru
          _
      $region12: #{tpu_custom_call.1} parent=5 // pred_fallthru
        _
      %p176 = scmp.lt.s32.totalorder %s17, 2
      // Predicated region
      $region25: #{tpu_custom_call.1} parent=5 // pred_check
        %p177 = pneg %p176
      $region26: #{tpu_custom_call.1} parent=5 // pred_check_branch
        %179 = sbr.rel (%p177) target = $region28
      $region27: #{tpu_custom_call.1} parent=5 // pred_region
        // Predicated region
        $region29: #{tpu_custom_call.1} parent=27 // pred_check
          %p180 = pneg %p37
        $region30: #{tpu_custom_call.1} parent=27 // pred_check_branch
          %182 = sbr.rel (%p180) target = $region32
        $region31: #{tpu_custom_call.1} parent=27 // pred_region
          %s183 = sand.u32 %s27, 1
          %s184 = scalar_lea.sflag [#allocation3], %s183
          %s185 = sand.u32 %s27, 1
          %s186 = smul.addr %s185, 64
          %s187 = scalar_lea.vmem [#allocation2], %s186
          %s188 = smul.u32 8, %s17
          %190 = vsyncadd %s184, 0
          %s191 = smul.addr %s188, 2
          %s192 = smul.addr %s191, 4
          %s193 = scalar_lea.hbm %s0, %s192
          %s194 = sshll.u32 %s193, 4
          %s195 = int_to_ptr.hbm [resolvable:$true] %s194
          %s196 = sshll.u32 %s187, 4
          %s197 = int_to_ptr.vmem [resolvable:$true] %s196
          %202 = dma.hbm_to_vmem [thread:$0]  %s195, 1024, %s197, %s184, 128, 128, 8
        $region32: #{tpu_custom_call.1} parent=27 // pred_fallthru
          _
      $region28: #{tpu_custom_call.1} parent=5 // pred_fallthru
        _
      %p203 = scmp.le.s32.totalorder 1, %s17
      %p204 = scmp.lt.s32.totalorder %s17, 3
      %p205 = pnand %p203, %p204
      %p206 = pneg %p205
      // Predicated region
      $region33: #{tpu_custom_call.1} parent=5 // pred_check
        _
      $region34: #{tpu_custom_call.1} parent=5 // pred_check_branch
        %208 = sbr.rel (%p205) target = $region36
      $region35: #{tpu_custom_call.1} parent=5 // pred_region
        %s209 = ssub.s32 %s17, 1
        %s210 = sand.u32 %s30, 1
        %s211 = scalar_lea.sflag [#allocation3], %s210
        %s212 = sand.u32 %s30, 1
        %s213 = smul.addr %s212, 64
        %s214 = scalar_lea.vmem [#allocation2], %s213
        // Predicated region
        $region37: #{tpu_custom_call.1} parent=35 // pred_check
          %p215 = pneg %p43
        $region38: #{tpu_custom_call.1} parent=35 // pred_check_branch
          %217 = sbr.rel (%p215) target = $region40
        $region39: #{tpu_custom_call.1} parent=35 // pred_region
          %219 = dma.done %s211, 1024
        $region40: #{tpu_custom_call.1} parent=35 // pred_fallthru
          _
        // Predicated region
        $region41: #{tpu_custom_call.1} parent=35 // pred_check
          %p220 = pneg %p64
        $region42: #{tpu_custom_call.1} parent=35 // pred_check_branch
          %222 = sbr.rel (%p220) target = $region44
        $region43: #{tpu_custom_call.1} parent=35 // pred_region
          %224 = dma.done [#allocation6], 64
        $region44: #{tpu_custom_call.1} parent=35 // pred_fallthru
          _
        // Predicated region
        $region45: #{tpu_custom_call.1} parent=35 // pred_check
          %p225 = pneg %p85
        $region46: #{tpu_custom_call.1} parent=35 // pred_check_branch
          %227 = sbr.rel (%p225) target = $region48
        $region47: #{tpu_custom_call.1} parent=35 // pred_region
          %229 = dma.done [#allocation6], 1024
        $region48: #{tpu_custom_call.1} parent=35 // pred_fallthru
          _
        %s230 = sand.u32 %s30, 1
        %s231 = scalar_lea.sflag [#allocation3], %s230
        %s232 = sand.u32 %s30, 1
        %s233 = smul.addr %s232, 64
        %s234 = scalar_lea.vmem [#allocation2], %s233
        %p235 = pneg %p43
        %p236 = pneg %p40
        %p237 = pneg %p64
        %p238 = pneg %p61
        %p239 = pneg %p85
        %p240 = pneg %p82
        %p241 = pneg %p106
        %p242 = pneg %p103
        %p243 = pneg %p132
        %p244 = pneg %p129
        %s245 = sand.u32 %s119, 1
        %s246 = scalar_lea.sflag [#allocation4], %s245
        %s247 = sand.u32 %s119, 1
        %s248 = smul.addr %s247, 8
        %s249 = scalar_lea.vmem [#allocation8], %s248
        %s250 = smul.u32 8, %s22
        %v251 = vld [vmem:[%s214] sm:$0xff]
        %v252 = vld [vmem:[%s214 + $0x8] sm:$0xff]
        %v253 = vld [vmem:[%s214 + $0x10] sm:$0xff]
        %v254 = vld [vmem:[%s214 + $0x18] sm:$0xff]
        %v255 = vld [vmem:[%s214 + $0x20] sm:$0xff]
        %v256 = vld [vmem:[%s214 + $0x28] sm:$0xff]
        %v257 = vld [vmem:[%s214 + $0x30] sm:$0xff]
        %v258 = vld [vmem:[%s214 + $0x38] sm:$0xff]
        %267 = vst [vmem:[#allocation1] ss:$2 sm:$0xff] %v251
        %v268 = vld.sshfl [vmem:[#allocation1] sm:$0xff pattern:$0x75316420]
        %v269 = vld.sshfl [vmem:[#allocation1 + $0x8] sm:$0xff pattern:$0x75316420]
        %s270 = scalar_lea.vmem [#allocation1], 16
        %271 = vst [vmem:[%s270] ss:$2 sm:$0xff] %v252
        %v272 = vld.sshfl [vmem:[#allocation1 + $0x10] sm:$0xff pattern:$0x75316420]
        %v273 = vld.sshfl [vmem:[#allocation1 + $0x18] sm:$0xff pattern:$0x75316420]
        %s274 = scalar_lea.vmem [#allocation1], 32
        %275 = vst [vmem:[%s274] ss:$2 sm:$0xff] %v253
        %v276 = vld.sshfl [vmem:[#allocation1 + $0x20] sm:$0xff pattern:$0x75316420]
        %v277 = vld.sshfl [vmem:[#allocation1 + $0x28] sm:$0xff pattern:$0x75316420]
        %s278 = scalar_lea.vmem [#allocation1], 48
        %279 = vst [vmem:[%s278] ss:$2 sm:$0xff] %v254
        %v280 = vld.sshfl [vmem:[#allocation1 + $0x30] sm:$0xff pattern:$0x75316420]
        %v281 = vld.sshfl [vmem:[#allocation1 + $0x38] sm:$0xff pattern:$0x75316420]
        %282 = vst [vmem:[#allocation1] ss:$2 sm:$0xff] %v255
        %v283 = vld.sshfl [vmem:[#allocation1] sm:$0xff pattern:$0x75316420]
        %v284 = vld.sshfl [vmem:[#allocation1 + $0x8] sm:$0xff pattern:$0x75316420]
        %285 = vst [vmem:[%s270] ss:$2 sm:$0xff] %v256
        %v286 = vld.sshfl [vmem:[#allocation1 + $0x10] sm:$0xff pattern:$0x75316420]
        %v287 = vld.sshfl [vmem:[#allocation1 + $0x18] sm:$0xff pattern:$0x75316420]
        %288 = vst [vmem:[%s274] ss:$2 sm:$0xff] %v257
        %v289 = vld.sshfl [vmem:[#allocation1 + $0x20] sm:$0xff pattern:$0x75316420]
        %v290 = vld.sshfl [vmem:[#allocation1 + $0x28] sm:$0xff pattern:$0x75316420]
        %291 = vst [vmem:[%s278] ss:$2 sm:$0xff] %v258
        %v292 = vld.sshfl [vmem:[#allocation1 + $0x30] sm:$0xff pattern:$0x75316420]
        %v293 = vld.sshfl [vmem:[#allocation1 + $0x38] sm:$0xff pattern:$0x75316420]
        %vm310 = vcmask 1043456
        %v311 = vsel %vm310, %v268, 0.0
        %v312 = vsel %vm310, %v269, 0.0
        %v313 = vadd.f32 %v311, %v312
        %314 = vadd.xlane.f32.xlu0 %v313
        %v315 = vpop.xlane.xlu0 %314
        %v316 = vsel %vm310, %v272, 0.0
        %v317 = vsel %vm310, %v273, 0.0
        %v318 = vadd.f32 %v316, %v317
        %319 = vadd.xlane.f32.xlu0 %v318
        %v320 = vpop.xlane.xlu0 %319
        %v321 = vsel %vm310, %v276, 0.0
        %v322 = vsel %vm310, %v277, 0.0
        %v323 = vadd.f32 %v321, %v322
        %324 = vadd.xlane.f32.xlu0 %v323
        %v325 = vpop.xlane.xlu0 %324
        %v326 = vsel %vm310, %v280, 0.0
        %v327 = vsel %vm310, %v281, 0.0
        %v328 = vadd.f32 %v326, %v327
        %329 = vadd.xlane.f32.xlu0 %v328
        %v330 = vpop.xlane.xlu0 %329
        %v331 = vsel %vm310, %v283, 0.0
        %v332 = vsel %vm310, %v284, 0.0
        %v333 = vadd.f32 %v331, %v332
        %334 = vadd.xlane.f32.xlu0 %v333
        %v335 = vpop.xlane.xlu0 %334
        %v336 = vsel %vm310, %v286, 0.0
        %v337 = vsel %vm310, %v287, 0.0
        %v338 = vadd.f32 %v336, %v337
        %339 = vadd.xlane.f32.xlu0 %v338
        %v340 = vpop.xlane.xlu0 %339
        %v341 = vsel %vm310, %v289, 0.0
        %v342 = vsel %vm310, %v290, 0.0
        %v343 = vadd.f32 %v341, %v342
        %344 = vadd.xlane.f32.xlu0 %v343
        %v345 = vpop.xlane.xlu0 %344
        %v346 = vsel %vm310, %v292, 0.0
        %v347 = vsel %vm310, %v293, 0.0
        %v348 = vadd.f32 %v346, %v347
        %349 = vadd.xlane.f32.xlu0 %v348
        %v350 = vpop.xlane.xlu0 %349
        %v351 = vrcp.pop 256.0
        %v352 = vmul.f32 256.0, %v351
        %v353 = vsub.f32 1.0, %v352
        %v354 = vmul.f32 %v351, %v353
        %v355 = vadd.f32 %v351, %v354
        %vm356 = vweird.f32 %v351
        %v357 = vsel %vm356, %v351, %v355
        %v358 = vmul.f32 %v315, %v357
        %v359 = vmul.f32 %v320, %v357
        %v360 = vmul.f32 %v325, %v357
        %v361 = vmul.f32 %v330, %v357
        %v362 = vmul.f32 %v335, %v357
        %v363 = vmul.f32 %v340, %v357
        %v364 = vmul.f32 %v345, %v357
        %v365 = vmul.f32 %v350, %v357
        %v366 = vld [vmem:[#allocation5] sm:$0xf]
        %v375 = vlaneseq
        %v376 = vand.u32 %v375, 127
        %v377 = vperm.slane %v358, %v376
        %v378 = vperm.slane %v359, %v376
        %v379 = vperm.slane %v360, %v376
        %v380 = vperm.slane %v361, %v376
        %v381 = vperm.slane %v362, %v376
        %v382 = vperm.slane %v363, %v376
        %v383 = vperm.slane %v364, %v376
        %v384 = vperm.slane %v365, %v376
        %vm385 = vcmask 1041409
        %v386 = vsel %vm385, %v378, %v377
        %vm387 = vcmask 1042434
        %v388 = vsel %vm387, %v379, %v386
        %vm389 = vcmask 1043459
        %v390 = vsel %vm389, %v380, %v388
        %vm391 = vcmask 1044484
        %v392 = vsel %vm391, %v381, %v390
        %vm393 = vcmask 1045509
        %v394 = vsel %vm393, %v382, %v392
        %vm395 = vcmask 1046534
        %v396 = vsel %vm395, %v383, %v394
        %vm397 = vcmask 1047559
        %v398 = vsel %vm397, %v384, %v396
        %vm399 = vcmask 31744
        %v400 = vsel %vm399, %v398, 0
        %v403 = vsel %vm310, %v366, 0
        %405 = vmatpush.msra.mxu0 0.0
        %406 = vmatpush.msra.mxu0 0.0
        %407 = vmatpush.msra.mxu0 0.0
        %408 = vmatpush.msra.mxu0 0.0
        %409 = vmatpush.msra.mxu0 0.0
        %410 = vmatpush.msra.mxu0 0.0
        %411 = vmatpush.msra.mxu0 0.0
        %412 = vmatpush.msra.mxu0 0.0
        %413 = vmatpush.msra.mxu0 0.0
        %414 = vmatpush.msra.mxu0 0.0
        %415 = vmatpush.msra.mxu0 0.0
        %416 = vmatpush.msra.mxu0 0.0
        %417 = vmatpush.msra.mxu0 0.0
        %418 = vmatpush.msra.mxu0 0.0
        %419 = vmatpush.msra.mxu0 0.0
        %420 = vmatpush.msra.mxu0 %v403
        %421 = vmatmul.f32.gmra.mxu0 %v400
        %v422 = vpop.f32.mrf.mxu0
        %v423 = vadd.f32 0.0, %v422
        %424 = vdwg.mxu0
        %v425 = vpack.c.bf16 %v423, %v423
        %v426 = vld [vmem:[#allocation7] sm:$0xf]
        %v427 = vld [vmem:[#allocation7 + $0x4] sm:$0xf]
        %v428 = vld [vmem:[#allocation7 + $0x8] sm:$0xf]
        %v429 = vld [vmem:[#allocation7 + $0xc] sm:$0xf]
        %v430 = vld [vmem:[#allocation7 + $0x10] sm:$0xf]
        %v431 = vld [vmem:[#allocation7 + $0x14] sm:$0xf]
        %v432 = vld [vmem:[#allocation7 + $0x18] sm:$0xf]
        %v433 = vld [vmem:[#allocation7 + $0x1c] sm:$0xf]
        %v434 = vld [vmem:[#allocation7 + $0x20] sm:$0xf]
        %v435 = vld [vmem:[#allocation7 + $0x24] sm:$0xf]
        %v436 = vld [vmem:[#allocation7 + $0x28] sm:$0xf]
        %v437 = vld [vmem:[#allocation7 + $0x2c] sm:$0xf]
        %v438 = vld [vmem:[#allocation7 + $0x30] sm:$0xf]
        %v439 = vld [vmem:[#allocation7 + $0x34] sm:$0xf]
        %v440 = vld [vmem:[#allocation7 + $0x38] sm:$0xf]
        %v441 = vld [vmem:[#allocation7 + $0x3c] sm:$0xf]
        %v442 = vld [vmem:[%s3] sm:$0x1]
        %v444 = vperm.slane %v442, 0
        %v462 = vunpack.c.l.b16 %v426
        %v463 = vunpack.c.l.b16 %v427
        %v464 = vunpack.c.l.b16 %v428
        %v465 = vunpack.c.l.b16 %v429
        %v466 = vunpack.c.l.b16 %v430
        %v467 = vunpack.c.l.b16 %v431
        %v468 = vunpack.c.l.b16 %v432
        %v469 = vunpack.c.l.b16 %v433
        %v470 = vunpack.c.l.b16 %v434
        %v471 = vunpack.c.l.b16 %v435
        %v472 = vunpack.c.l.b16 %v436
        %v473 = vunpack.c.l.b16 %v437
        %v474 = vunpack.c.l.b16 %v438
        %v475 = vunpack.c.l.b16 %v439
        %v476 = vunpack.c.l.b16 %v440
        %v477 = vunpack.c.l.b16 %v441
        %v478 = vpack.c.b16 %v463, %v462
        %v479 = vpack.c.b16 %v465, %v464
        %v480 = vpack.c.b16 %v467, %v466
        %v481 = vpack.c.b16 %v469, %v468
        %v482 = vpack.c.b16 %v471, %v470
        %v483 = vpack.c.b16 %v473, %v472
        %v484 = vpack.c.b16 %v475, %v474
        %v485 = vpack.c.b16 %v477, %v476
        %494 = vmatpush.bf16.msra.mxu0 %v485
        %495 = vmatpush.bf16.msra.mxu0 %v484
        %496 = vmatpush.bf16.msra.mxu0 %v483
        %497 = vmatpush.bf16.msra.mxu0 %v482
        %498 = vmatpush.bf16.msra.mxu0 %v481
        %499 = vmatpush.bf16.msra.mxu0 %v480
        %500 = vmatpush.bf16.msra.mxu0 %v479
        %501 = vmatpush.bf16.msra.mxu0 %v478
        %502 = vmatmul.bf16.gmra.mxu0 %v425
        %v503 = vpop.f32.mrf.mxu0
        %v504 = vadd.f32 %v444, %v503
        %v505 = vpop.f32.mrf.mxu0
        %506 = vdwg.mxu0
        %507 = vst [vmem:[%s249] sm:$0xff] %v504
        %s508 = sand.u32 %s119, 1
        %s509 = scalar_lea.sflag [#allocation4], %s508
        %s510 = sand.u32 %s119, 1
        %s511 = smul.addr %s510, 8
        %s512 = scalar_lea.vmem [#allocation8], %s511
        // Predicated region
        $region49: #{tpu_custom_call.1} parent=35 // pred_check
          %p513 = pneg %p129
        $region50: #{tpu_custom_call.1} parent=35 // pred_check_branch
          %515 = sbr.rel (%p513) target = $region52
        $region51: #{tpu_custom_call.1} parent=35 // pred_region
          %517 = vsyncadd %s509, 0
          %s518 = smul.addr %s22, 8
          %s519 = scalar_lea.hbm %s4, %s518
          %s521 = sshll.u32 %s512, 4
          %s522 = int_to_ptr.vmem [resolvable:$true] %s521
          %s523 = sshll.u32 %s519, 4
          %s524 = int_to_ptr.hbm [resolvable:$true] %s523
          %526 = dma.vmem_to_hbm [thread:$0]  %s522, 128, %s524, %s509
        $region52: #{tpu_custom_call.1} parent=35 // pred_fallthru
          _
      $region36: #{tpu_custom_call.1} parent=5 // pred_fallthru
        _
      %p527 = scmp.le.s32.totalorder 2, %s17
      // Predicated region
      $region53: #{tpu_custom_call.1} parent=5 // pred_check
        %p528 = pneg %p527
      $region54: #{tpu_custom_call.1} parent=5 // pred_check_branch
        %530 = sbr.rel (%p528) target = $region56
      $region55: #{tpu_custom_call.1} parent=5 // pred_region
        %s531 = ssub.s32 %s17, 2
        // Predicated region
        $region57: #{tpu_custom_call.1} parent=55 // pred_check
          %p532 = pneg %p135
        $region58: #{tpu_custom_call.1} parent=55 // pred_check_branch
          %534 = sbr.rel (%p532) target = $region60
        $region59: #{tpu_custom_call.1} parent=55 // pred_region
          %s535 = sand.u32 %s120, 1
          %s536 = scalar_lea.sflag [#allocation4], %s535
          %s537 = sand.u32 %s120, 1
          %s538 = smul.addr %s537, 8
          %s539 = scalar_lea.vmem [#allocation8], %s538
          %541 = dma.done %s536, 128
        $region60: #{tpu_custom_call.1} parent=55 // pred_fallthru
          _
      $region56: #{tpu_custom_call.1} parent=5 // pred_fallthru
        _
    $region6: #{tpu_custom_call.1} parent=1 // loop_footer
      %s21 = sadd.s32 1, %s17
    $region7: #{tpu_custom_call.1} parent=1 // loop_footer_branch
      %16 = sbr.rel target = $region3
    $region8: #{tpu_custom_call.1} parent=1 // loop_exit
      _
    %542 = vsyncpa [#allocation3], 1
    %s543 = scalar_lea.sflag [#allocation3], 1
    %544 = vsyncpa %s543, 1
    %545 = vsyncpa [#allocation6], 1
    %546 = vsyncpa [#allocation4], 1
    %s547 = scalar_lea.sflag [#allocation4], 1
    %548 = vsyncpa %s547, 1

</llo_original>
